<compile_context>
chip_gen: v7x
topology: tpu7x:2x2x1
jax: 0.10.0
libtpu: 0.0.40
codegen_flags: <defaults>
</compile_context>

<pallas_src>
import functools

import jax
import jax.numpy as jnp
from jax.experimental import pallas as pl
from jax.experimental.pallas import tpu as pltpu


def _round_up(v, m):
    return ((v + m - 1) // m) * m


def _mine_kernel(x_ref, y_ref, ys_ref, w_ref, out_ref, acc_ref, *, total_n):
    step = pl.program_id(0)
    nsteps = pl.num_programs(0)

    xd = x_ref.shape[1]          # 8-aligned (wrapper pads feature dims)
    yd = y_ref.shape[1]          # 8-aligned
    b1_row = xd + yd             # 8-aligned slab row of b1
    w2_row = b1_row + 8          # 8-aligned slab row of the lane-dense W2 row

    @pl.when(step == 0)
    def _init():
        acc_ref[0] = jnp.float32(0.0)
        acc_ref[1] = jnp.float32(0.0)

    # All slices below start on 8-aligned sublane boundaries -> no VMEM copies.
    w1x = w_ref[0:xd, :]                                   # [xd, h_pad]
    w1y = w_ref[xd:b1_row, :]                              # [yd, h_pad]
    b1 = w_ref[b1_row:b1_row + 1, :].astype(jnp.float32)   # [1, h_pad]
    w2 = w_ref[w2_row:w2_row + 1, :].astype(jnp.float32)   # [1, h_pad]

    # First layer on the MXU; x-projection computed once and shared by the
    # paired and shuffled paths.  f32 accumulation regardless of input dtype.
    hx = jnp.dot(x_ref[...], w1x, preferred_element_type=jnp.float32)
    hy = jnp.dot(y_ref[...], w1y, preferred_element_type=jnp.float32)
    hys = jnp.dot(ys_ref[...], w1y, preferred_element_type=jnp.float32)

    h0 = jnp.maximum(hx + hy + b1, 0.0)    # T0 hidden, [tile_n, h_pad]
    h1 = jnp.maximum(hx + hys + b1, 0.0)   # T1 hidden, [tile_n, h_pad]

    # Second layer on VPU/XLU (output width 1 would waste the MXU).
    # b2 is dropped: it cancels exactly in mean(T0) - log(mean(exp(T1))).
    sum_t0 = jnp.sum(h0 * w2)                           # = sum_i T0[i]
    t1 = jnp.sum(h1 * w2, axis=-1, keepdims=True)       # [tile_n, 1]
    sum_exp_t1 = jnp.sum(jnp.exp(t1))

    acc_ref[0] += sum_t0
    acc_ref[1] += sum_exp_t1

    @pl.when(step == nsteps - 1)
    def _finalize():
        inv_n = jnp.float32(1.0 / total_n)
        out_ref[0, 0] = acc_ref[0] * inv_n - jnp.log(acc_ref[1] * inv_n)


def init_params(key, x_dim, y_dim, hidden_size):
    """torch.nn.Linear-style init (uniform +-1/sqrt(fan_in)).
    Weights stored as [in, out]; biases as [1, out]."""
    d = x_dim + y_dim
    k1, k2, k3, k4 = jax.random.split(key, 4)

    def lin(kw, kb, fan_in, fan_out):
        bound = 1.0 / jnp.sqrt(jnp.float32(fan_in))
        w = jax.random.uniform(kw, (fan_in, fan_out), jnp.float32, -bound, bound)
        b = jax.random.uniform(kb, (1, fan_out), jnp.float32, -bound, bound)
        return w, b

    w1, b1 = lin(k1, k2, d, hidden_size)
    w2, b2 = lin(k3, k4, hidden_size, 1)
    return (w1, b1, w2, b2)


def pack_params(params, x_dim, compute_dtype=jnp.float32):
    """One-time packing into a single lane-dense slab.

    Rows:  [0:xd_pad]            W1x   (zero-padded)
           [xd_pad:xd_pad+yd_pad] W1y  (zero-padded)
           [xd_pad+yd_pad]        b1   (row, then 7 zero rows for alignment)
           [xd_pad+yd_pad+8]      W2^T (lane-dense [1, h_pad] row)
    b2 is intentionally omitted (cancels in the MINE lower bound).
    Hidden dim zero-padded to a multiple of 128."""
    w1, b1, w2, _b2 = params
    d, hdim = w1.shape
    y_dim = d - x_dim
    xd_pad = _round_up(x_dim, 8)
    yd_pad = _round_up(y_dim, 8)
    h_pad = _round_up(hdim, 128)

    rows = xd_pad + yd_pad + 16
    slab = jnp.zeros((rows, h_pad), jnp.float32)
    slab = slab.at[0:x_dim, 0:hdim].set(w1[:x_dim])
    slab = slab.at[xd_pad:xd_pad + y_dim, 0:hdim].set(w1[x_dim:])
    slab = slab.at[xd_pad + yd_pad, 0:hdim].set(b1[0])
    slab = slab.at[xd_pad + yd_pad + 8, 0:hdim].set(w2[:, 0])
    return slab.astype(compute_dtype), xd_pad, yd_pad


def mine_forward(x, y, packed, key, *, compute_dtype=jnp.float32,
                 max_tile_n=512):
    """MINE lower bound: mean(T0) - log(mean(exp(T1))). Returns a scalar f32."""
    slab, xd_pad, yd_pad = packed
    n = y.shape[0]

    # torch.randint(sample_size, (sample_size,)) equivalent; gather done here
    # (plain XLA gather) instead of an O(n^2) in-kernel one-hot matmul.
    idx = jax.random.randint(key, (n,), 0, n, dtype=jnp.int32)
    y_shuf = jnp.take(y, idx, axis=0)

    def pad_cols(a, target):
        pad = target - a.shape[1]
        a = a if pad == 0 else jnp.pad(a, ((0, 0), (0, pad)))
        return a.astype(compute_dtype)

    xp = pad_cols(x, xd_pad)
    yp = pad_cols(y, yd_pad)
    ysp = pad_cols(y_shuf, yd_pad)
    slab = slab.astype(compute_dtype)

    tile_n = n if n <= max_tile_n else max_tile_n
    assert n % tile_n == 0, "N must be divisible by the batch tile"
    grid = (n // tile_n,)

    kernel = functools.partial(_mine_kernel, total_n=n)

    out = pl.pallas_call(
        kernel,
        out_shape=jax.ShapeDtypeStruct((1, 1), jnp.float32),
        grid_spec=pltpu.PrefetchScalarGridSpec(
            num_scalar_prefetch=0,
            grid=grid,
            in_specs=[
                pl.BlockSpec((tile_n, xd_pad), lambda i: (i, 0)),
                pl.BlockSpec((tile_n, yd_pad), lambda i: (i, 0)),
                pl.BlockSpec((tile_n, yd_pad), lambda i: (i, 0)),
                pl.BlockSpec(slab.shape, lambda i: (0, 0)),   # resident weights
            ],
            out_specs=pl.BlockSpec((1, 1), lambda i: (0, 0),
                                   memory_space=pltpu.MemorySpace.SMEM),
            scratch_shapes=[pltpu.SMEM((2,), jnp.float32)],
        ),
        compiler_params=pltpu.CompilerParams(
            dimension_semantics=("arbitrary",),
            vmem_limit_bytes=32 * 1024 * 1024,
        ),
    )(xp, yp, ysp, slab)
    return out[0, 0]


def _reference_forward(x, y, params, key):
    """Pure-JAX reference mirroring the PyTorch module (including b2)."""
    n = y.shape[0]
    idx = jax.random.randint(key, (n,), 0, n, dtype=jnp.int32)
    y_shuf = y[idx]
    w1, b1, w2, b2 = params
    t0 = jnp.maximum(jnp.concatenate([x, y], axis=-1) @ w1 + b1, 0.0) @ w2 + b2
    t1 = jnp.maximum(jnp.concatenate([x, y_shuf], axis=-1) @ w1 + b1, 0.0) @ w2 + b2
    return jnp.mean(t0) - jnp.log(jnp.mean(jnp.exp(t1)))


if __name__ == "__main__":
    X_DIM, Y_DIM, HIDDEN = 32, 16, 32

    key = jax.random.PRNGKey(0)
    k_x, k_y, k_params, k_idx, k_x2, k_y2 = jax.random.split(key, 6)

    params = init_params(k_params, X_DIM, Y_DIM, HIDDEN)
    packed_f32 = pack_params(params, X_DIM, jnp.float32)

    # Small batch, single-tile grid, f32.
    N = 8
    x = jax.random.normal(k_x, (N, X_DIM), jnp.float32)
    y = jax.random.normal(k_y, (N, Y_DIM), jnp.float32)
    out_small = mine_forward(x, y, packed_f32, k_idx)
    jax.block_until_ready(out_small)
    ref_small = _reference_forward(x, y, params, k_idx)
    assert jnp.allclose(out_small, ref_small, atol=1e-3, rtol=1e-3), (out_small, ref_small)

    # Larger batch, multi-step pipelined grid (grid=(4,)), f32.
    N2 = 512
    x2 = jax.random.normal(k_x2, (N2, X_DIM), jnp.float32)
    y2 = jax.random.normal(k_y2, (N2, Y_DIM), jnp.float32)
    out_grid = mine_forward(x2, y2, packed_f32, k_idx, max_tile_n=128)
    jax.block_until_ready(out_grid)
    ref_grid = _reference_forward(x2, y2, params, k_idx)
    assert jnp.allclose(out_grid, ref_grid, atol=1e-3, rtol=1e-3), (out_grid, ref_grid)

    # bf16 MXU operands, f32 accumulation (looser tolerance vs f32 reference).
    packed_bf16 = pack_params(params, X_DIM, jnp.bfloat16)
    out_bf16 = mine_forward(x2, y2, packed_bf16, k_idx,
                            compute_dtype=jnp.bfloat16, max_tile_n=128)
    jax.block_until_ready(out_bf16)
    assert bool(jnp.isfinite(out_bf16))
    assert jnp.allclose(out_bf16, ref_grid, atol=0.1, rtol=0.0), (out_bf16, ref_grid)

    print("KERNEL_OK")
</pallas_src>

<mosaic_0001>
module attributes {stable_mosaic.version = 11 : i64} {
  func.func @_mine_kernel(%arg0: i32, %arg1: memref<8x32xf32, #tpu.memory_space<vmem>>, %arg2: memref<8x16xf32, #tpu.memory_space<vmem>>, %arg3: memref<8x16xf32, #tpu.memory_space<vmem>>, %arg4: memref<64x128xf32, #tpu.memory_space<vmem>>, %arg5: memref<1x1xf32, #tpu.memory_space<smem>>, %arg6: memref<2xf32, #tpu.memory_space<smem>>) attributes {dimension_semantics = [#tpu.dimension_semantics<arbitrary>], iteration_bounds = array<i64: 1>, scalar_prefetch = 0 : i64, scratch_operands = 1 : i64, tpu.core_type = #tpu.core_type<tc>, window_params = [{transform_indices = @transform_0, window_bounds = array<i64: 8, 32>}, {transform_indices = @transform_1, window_bounds = array<i64: 8, 16>}, {transform_indices = @transform_2, window_bounds = array<i64: 8, 16>}, {pipeline_mode = #tpu.pipeline_mode<synchronous>, transform_indices = @transform_3, window_bounds = array<i64: 64, 128>}, {transform_indices = @transform_4, window_bounds = array<i64: 1, 1>}]} {
    %c0_i32 = arith.constant 0 : i32
    %0 = arith.cmpi eq, %arg0, %c0_i32 : i32
    %1 = arith.extui %0 : i1 to i32
    %c0_i32_0 = arith.constant 0 : i32
    %2 = arith.cmpi ne, %1, %c0_i32_0 : i32
    scf.if %2 {
      %cst_23 = arith.constant 0.000000e+00 : f32
      %c0_24 = arith.constant 0 : index
      %47 = memref.load %arg6[%c0_24] : memref<2xf32, #tpu.memory_space<smem>>
      memref.store %cst_23, %arg6[%c0_24] : memref<2xf32, #tpu.memory_space<smem>>
      %cst_25 = arith.constant 0.000000e+00 : f32
      %c1_26 = arith.constant 1 : index
      %48 = memref.load %arg6[%c1_26] : memref<2xf32, #tpu.memory_space<smem>>
      memref.store %cst_25, %arg6[%c1_26] : memref<2xf32, #tpu.memory_space<smem>>
    } else {
    }
    %c0 = arith.constant 0 : index
    %c0_1 = arith.constant 0 : index
    %3 = vector.load %arg4[%c0, %c0_1] : memref<64x128xf32, #tpu.memory_space<vmem>>, vector<32x128xf32>
    %c32 = arith.constant 32 : index
    %c0_2 = arith.constant 0 : index
    %4 = vector.load %arg4[%c32, %c0_2] : memref<64x128xf32, #tpu.memory_space<vmem>>, vector<16x128xf32>
    %c48 = arith.constant 48 : index
    %c0_3 = arith.constant 0 : index
    %5 = vector.load %arg4[%c48, %c0_3] : memref<64x128xf32, #tpu.memory_space<vmem>>, vector<1x128xf32>
    %c56 = arith.constant 56 : index
    %c0_4 = arith.constant 0 : index
    %6 = vector.load %arg4[%c56, %c0_4] : memref<64x128xf32, #tpu.memory_space<vmem>>, vector<1x128xf32>
    %c0_5 = arith.constant 0 : index
    %c0_6 = arith.constant 0 : index
    %7 = vector.load %arg1[%c0_5, %c0_6] : memref<8x32xf32, #tpu.memory_space<vmem>>, vector<8x32xf32>
    %cst = arith.constant dense<0.000000e+00> : vector<8x128xf32>
    %8 = tpu.matmul %7, %3, %cst {dimension_numbers = #tpu.dot_dimension_numbers<[1], [0], [0], [1], [0, 0, 1, 1], [], []>} : vector<8x32xf32>, vector<32x128xf32>, vector<8x128xf32> -> vector<8x128xf32>
    %c0_7 = arith.constant 0 : index
    %c0_8 = arith.constant 0 : index
    %9 = vector.load %arg2[%c0_7, %c0_8] : memref<8x16xf32, #tpu.memory_space<vmem>>, vector<8x16xf32>
    %cst_9 = arith.constant dense<0.000000e+00> : vector<8x128xf32>
    %10 = tpu.matmul %9, %4, %cst_9 {dimension_numbers = #tpu.dot_dimension_numbers<[1], [0], [0], [1], [0, 0, 1, 1], [], []>} : vector<8x16xf32>, vector<16x128xf32>, vector<8x128xf32> -> vector<8x128xf32>
    %c0_10 = arith.constant 0 : index
    %c0_11 = arith.constant 0 : index
    %11 = vector.load %arg3[%c0_10, %c0_11] : memref<8x16xf32, #tpu.memory_space<vmem>>, vector<8x16xf32>
    %cst_12 = arith.constant dense<0.000000e+00> : vector<8x128xf32>
    %12 = tpu.matmul %11, %4, %cst_12 {dimension_numbers = #tpu.dot_dimension_numbers<[1], [0], [0], [1], [0, 0, 1, 1], [], []>} : vector<8x16xf32>, vector<16x128xf32>, vector<8x128xf32> -> vector<8x128xf32>
    %13 = arith.addf %8, %10 : vector<8x128xf32>
    %14 = vector.broadcast %5 : vector<1x128xf32> to vector<8x128xf32>
    %15 = arith.addf %13, %14 : vector<8x128xf32>
    %cst_13 = arith.constant 0.000000e+00 : f32
    %16 = vector.broadcast %cst_13 : f32 to vector<8x128xf32>
    %17 = arith.maximumf %15, %16 : vector<8x128xf32>
    %18 = arith.addf %8, %12 : vector<8x128xf32>
    %19 = vector.broadcast %5 : vector<1x128xf32> to vector<8x128xf32>
    %20 = arith.addf %18, %19 : vector<8x128xf32>
    %cst_14 = arith.constant 0.000000e+00 : f32
    %21 = vector.broadcast %cst_14 : f32 to vector<8x128xf32>
    %22 = arith.maximumf %20, %21 : vector<8x128xf32>
    %23 = vector.broadcast %6 : vector<1x128xf32> to vector<8x128xf32>
    %24 = arith.mulf %17, %23 : vector<8x128xf32>
    %25 = vector.shape_cast %24 : vector<8x128xf32> to vector<1x8x128xf32>
    %cst_15 = arith.constant dense<0.000000e+00> : vector<1xf32>
    %26 = vector.multi_reduction <add>, %25, %cst_15 [1, 2] : vector<1x8x128xf32> to vector<1xf32>
    %27 = vector.shape_cast %26 : vector<1xf32> to vector<1x1x1xf32>
    %28 = vector.extract %27[0, 0, 0] : f32 from vector<1x1x1xf32>
    %29 = vector.broadcast %6 : vector<1x128xf32> to vector<8x128xf32>
    %30 = arith.mulf %22, %29 : vector<8x128xf32>
    %cst_16 = arith.constant dense<0.000000e+00> : vector<8xf32>
    %31 = vector.multi_reduction <add>, %30, %cst_16 [1] : vector<8x128xf32> to vector<8xf32>
    %32 = vector.shape_cast %31 : vector<8xf32> to vector<8x1xf32>
    %33 = math.exp %32 : vector<8x1xf32>
    %34 = vector.shape_cast %33 : vector<8x1xf32> to vector<1x8x1xf32>
    %cst_17 = arith.constant dense<0.000000e+00> : vector<1xf32>
    %35 = vector.multi_reduction <add>, %34, %cst_17 [1, 2] : vector<1x8x1xf32> to vector<1xf32>
    %36 = vector.shape_cast %35 : vector<1xf32> to vector<1x1x1xf32>
    %37 = vector.extract %36[0, 0, 0] : f32 from vector<1x1x1xf32>
    %c0_18 = arith.constant 0 : index
    %38 = memref.load %arg6[%c0_18] : memref<2xf32, #tpu.memory_space<smem>>
    %39 = arith.addf %38, %28 : f32
    %c0_19 = arith.constant 0 : index
    %40 = memref.load %arg6[%c0_19] : memref<2xf32, #tpu.memory_space<smem>>
    memref.store %39, %arg6[%c0_19] : memref<2xf32, #tpu.memory_space<smem>>
    %c1 = arith.constant 1 : index
    %41 = memref.load %arg6[%c1] : memref<2xf32, #tpu.memory_space<smem>>
    %42 = arith.addf %41, %37 : f32
    %c1_20 = arith.constant 1 : index
    %43 = memref.load %arg6[%c1_20] : memref<2xf32, #tpu.memory_space<smem>>
    memref.store %42, %arg6[%c1_20] : memref<2xf32, #tpu.memory_space<smem>>
    %c0_i32_21 = arith.constant 0 : i32
    %44 = arith.cmpi eq, %arg0, %c0_i32_21 : i32
    %45 = arith.extui %44 : i1 to i32
    %c0_i32_22 = arith.constant 0 : i32
    %46 = arith.cmpi ne, %45, %c0_i32_22 : i32
    scf.if %46 {
      %c0_23 = arith.constant 0 : index
      %47 = memref.load %arg6[%c0_23] : memref<2xf32, #tpu.memory_space<smem>>
      %cst_24 = arith.constant 1.250000e-01 : f32
      %48 = arith.mulf %47, %cst_24 : f32
      %c1_25 = arith.constant 1 : index
      %49 = memref.load %arg6[%c1_25] : memref<2xf32, #tpu.memory_space<smem>>
      %cst_26 = arith.constant 1.250000e-01 : f32
      %50 = arith.mulf %49, %cst_26 : f32
      %51 = math.log %50 : f32
      %52 = arith.subf %48, %51 : f32
      %c0_27 = arith.constant 0 : index
      %c0_28 = arith.constant 0 : index
      %53 = memref.load %arg5[%c0_27, %c0_28] : memref<1x1xf32, #tpu.memory_space<smem>>
      memref.store %52, %arg5[%c0_27, %c0_28] : memref<1x1xf32, #tpu.memory_space<smem>>
    } else {
    }
    return
  }
  func.func @transform_0(%arg0: i32) -> (i32, i32) {
    %c0_i32 = arith.constant 0 : i32
    %c0_i32_0 = arith.constant 0 : i32
    return %arg0, %c0_i32 : i32, i32
  }
  func.func @transform_1(%arg0: i32) -> (i32, i32) {
    %c0_i32 = arith.constant 0 : i32
    %c0_i32_0 = arith.constant 0 : i32
    return %arg0, %c0_i32 : i32, i32
  }
  func.func @transform_2(%arg0: i32) -> (i32, i32) {
    %c0_i32 = arith.constant 0 : i32
    %c0_i32_0 = arith.constant 0 : i32
    return %arg0, %c0_i32 : i32, i32
  }
  func.func @transform_3(%arg0: i32) -> (i32, i32) {
    %c0_i32 = arith.constant 0 : i32
    %c0_i32_0 = arith.constant 0 : i32
    %c0_i32_1 = arith.constant 0 : i32
    return %c0_i32, %c0_i32_0 : i32, i32
  }
  func.func @transform_4(%arg0: i32) -> (i32, i32) {
    %c0_i32 = arith.constant 0 : i32
    %c0_i32_0 = arith.constant 0 : i32
    %c0_i32_1 = arith.constant 0 : i32
    return %c0_i32, %c0_i32_0 : i32, i32
  }
}

</mosaic_0001>

<llo_original>
// kernel: tpu_custom_call.1
$region0: #{tpu_custom_call.1}
  #allocation0 [shape = 'u32[]', space=smem, size = 0x4, offset = 0x4, fixed_abs, tag = 'smem constant byte address 0x4 - core index']
  #allocation1 [shape = 'u32[144,128]{1,0:T(1,128)}', space=vmem, size = 0x12000, scoped, tag = 'internal scratch']
  #allocation2 [shape = 'f32[2]{0:T(128)}', space=smem, size = 0x200, scoped, tag = 'scratch operand']
  %s0 = inlined_call_operand.hbm [shape: f32[8,32], index: 0, kind: input, shape index: {}]
  %s1 = inlined_call_operand.hbm [shape: f32[8,16], index: 1, kind: input, shape index: {}]
  %s2 = inlined_call_operand.hbm [shape: f32[8,16], index: 2, kind: input, shape index: {}]
  %s3 = inlined_call_operand.hbm [shape: f32[64,128], index: 3, kind: input, shape index: {}]
  %s4 = inlined_call_operand.hbm [shape: f32[1,1], index: 4, kind: output, shape index: {}]
  %s5 = sld [smem:[#allocation0]]
  $region50: #{tpu_custom_call.1} parent=0
    _
  %s7 = ssub.s32 1, %s5
  %s8 = scalar_select 0, %s7, %s5
  $region1: #{tpu_custom_call.1} parent=0
    #allocation3 [shape = 'u8[4096]{0}', space=vmem, size = 0x1000, scoped, tag = 'input window, operand 0, single buffered']
    #allocation4 [shape = 's32[1]{0}', space=sflag, size = 0x4, scoped, tag = 'scoped memory for tpu_custom_call.1']
    #allocation5 [shape = 's32[1]{0}', space=sflag, size = 0x4, scoped, tag = 'scoped memory for tpu_custom_call.1']
    #allocation6 [shape = 'u8[4096]{0}', space=vmem, size = 0x1000, scoped, tag = 'input window, operand 1, single buffered']
    #allocation7 [shape = 's32[1]{0}', space=sflag, size = 0x4, scoped, tag = 'scoped memory for tpu_custom_call.1']
    #allocation8 [shape = 'u8[4096]{0}', space=vmem, size = 0x1000, scoped, tag = 'input window, operand 2, single buffered']
    #allocation9 [shape = 'u8[32768]{0}', space=vmem, size = 0x8000, scoped, tag = 'input window, operand 3, single buffered']
    #allocation10 [shape = 's32[1]{0}', space=sflag, size = 0x4, scoped, tag = 'scoped memory for tpu_custom_call.1']
    #allocation11 [shape = 'u8[512]{0}', space=smem, size = 0x200, scoped, tag = 'output window, operand 0, single buffered']
    %9 = vsyncpa [#allocation4], 0
    %10 = vsyncpa [#allocation7], 0
    %11 = vsyncpa [#allocation10], 0
    %12 = vsyncpa [#allocation5], 0
    // Predicated region
    $region2: #{tpu_custom_call.1} parent=1 // pred_check
      _
    $region3: #{tpu_custom_call.1} parent=1 // pred_check_branch
      %14 = sbr.rel (0) target = $region5
    $region4: #{tpu_custom_call.1} parent=1 // pred_region
      %s16 = ssub.s32 128, 128
      %17 = vsyncadd [#allocation4], %s16
      %s19 = sshll.u32 [#allocation3], 4
      %s20 = int_to_ptr.vmem [resolvable:$true] %s19
      %22 = dma.hbm_to_vmem [thread:$0]  %s0, 128, %s20, [#allocation4]
    $region5: #{tpu_custom_call.1} parent=1 // pred_fallthru
      _
    // Predicated region
    $region6: #{tpu_custom_call.1} parent=1 // pred_check
      _
    $region7: #{tpu_custom_call.1} parent=1 // pred_check_branch
      %24 = sbr.rel (0) target = $region9
    $region8: #{tpu_custom_call.1} parent=1 // pred_region
      %s26 = ssub.s32 128, 128
      %27 = vsyncadd [#allocation7], %s26
      %s29 = sshll.u32 [#allocation6], 4
      %s30 = int_to_ptr.vmem [resolvable:$true] %s29
      %32 = dma.hbm_to_vmem [thread:$0]  %s1, 128, %s30, [#allocation7]
    $region9: #{tpu_custom_call.1} parent=1 // pred_fallthru
      _
    // Predicated region
    $region10: #{tpu_custom_call.1} parent=1 // pred_check
      _
    $region11: #{tpu_custom_call.1} parent=1 // pred_check_branch
      %34 = sbr.rel (0) target = $region13
    $region12: #{tpu_custom_call.1} parent=1 // pred_region
      %s36 = ssub.s32 128, 128
      %37 = vsyncadd [#allocation7], %s36
      %s39 = sshll.u32 [#allocation8], 4
      %s40 = int_to_ptr.vmem [resolvable:$true] %s39
      %42 = dma.hbm_to_vmem [thread:$0]  %s2, 128, %s40, [#allocation7]
    $region13: #{tpu_custom_call.1} parent=1 // pred_fallthru
      _
    // Predicated region
    $region14: #{tpu_custom_call.1} parent=1 // pred_check
      _
    $region15: #{tpu_custom_call.1} parent=1 // pred_check_branch
      %44 = sbr.rel (0) target = $region17
    $region16: #{tpu_custom_call.1} parent=1 // pred_region
      %s46 = ssub.s32 1024, 1024
      %47 = vsyncadd [#allocation10], %s46
      %s48 = sshll.u32 [#allocation9], 4
      %s49 = int_to_ptr.vmem [resolvable:$true] %s48
      %54 = dma.hbm_to_vmem [thread:$0]  %s3, 1024, %s49, [#allocation10], 128, 128, 8
    $region17: #{tpu_custom_call.1} parent=1 // pred_fallthru
      _
    // Predicated region
    $region18: #{tpu_custom_call.1} parent=1 // pred_check
      _
    $region19: #{tpu_custom_call.1} parent=1 // pred_check_branch
      %56 = sbr.rel (0) target = $region21
    $region20: #{tpu_custom_call.1} parent=1 // pred_region
      %57 = dma.done [#allocation4], 128
    $region21: #{tpu_custom_call.1} parent=1 // pred_fallthru
      _
    // Predicated region
    $region22: #{tpu_custom_call.1} parent=1 // pred_check
      _
    $region23: #{tpu_custom_call.1} parent=1 // pred_check_branch
      %59 = sbr.rel (0) target = $region25
    $region24: #{tpu_custom_call.1} parent=1 // pred_region
      %60 = dma.done [#allocation7], 128
    $region25: #{tpu_custom_call.1} parent=1 // pred_fallthru
      _
    // Predicated region
    $region26: #{tpu_custom_call.1} parent=1 // pred_check
      _
    $region27: #{tpu_custom_call.1} parent=1 // pred_check_branch
      %62 = sbr.rel (0) target = $region29
    $region28: #{tpu_custom_call.1} parent=1 // pred_region
      %63 = dma.done [#allocation7], 128
    $region29: #{tpu_custom_call.1} parent=1 // pred_fallthru
      _
    // Predicated region
    $region30: #{tpu_custom_call.1} parent=1 // pred_check
      _
    $region31: #{tpu_custom_call.1} parent=1 // pred_check_branch
      %65 = sbr.rel (0) target = $region33
    $region32: #{tpu_custom_call.1} parent=1 // pred_region
      %66 = dma.done [#allocation10], 1024
    $region33: #{tpu_custom_call.1} parent=1 // pred_fallthru
      _
    %p67 = scmp.eq.s32.totalorder 0, 0
    // Predicated region
    $region34: #{tpu_custom_call.1} parent=1 // pred_check
      %p68 = pneg %p67
    $region35: #{tpu_custom_call.1} parent=1 // pred_check_branch
      %70 = sbr.rel (%p68) target = $region37
    $region36: #{tpu_custom_call.1} parent=1 // pred_region
      %s71 = scalar_lea.smem [#allocation2], 0
      %72 = sst [smem:[%s71]] 0.0
      %s73 = scalar_lea.smem [#allocation2], 1
      %74 = sst [smem:[%s73]] 0.0
    $region37: #{tpu_custom_call.1} parent=1 // pred_fallthru
      _
    %v75 = vld [vmem:[#allocation9] sm:$0xff]
    %v76 = vld [vmem:[#allocation9 + $0x8] sm:$0xff]
    %v77 = vld [vmem:[#allocation9 + $0x10] sm:$0xff]
    %v78 = vld [vmem:[#allocation9 + $0x18] sm:$0xff]
    %v79 = vld [vmem:[#allocation9 + $0x20] sm:$0xff]
    %v80 = vld [vmem:[#allocation9 + $0x28] sm:$0xff]
    %v81 = vld [vmem:[#allocation9 + $0x30] sm:$0x1]
    %v82 = vld [vmem:[#allocation9 + $0x38] sm:$0x1]
    %v83 = vld [vmem:[#allocation3] sm:$0xff]
    %vm84 = vcmask 261120
    %v86 = vsel %vm84, %v83, 0
    %88 = vmatprep.subr.mxu0 0.0
    %89 = vmatpush1.msra.mxu0 %v75
    %90 = vmatprep.subr.mxu0 0.0
    %91 = vmatpush1.msra.mxu0 %v76
    %92 = vmatprep.subr.mxu0 0.0
    %93 = vmatpush1.msra.mxu0 %v77
    %94 = vmatprep.subr.mxu0 0.0
    %95 = vmatpush1.msra.mxu0 %v78
    %96 = vmatprep.subr.mxu0 0.0
    %97 = vmatpush1.msra.mxu0 0.0
    %98 = vmatprep.subr.mxu0 0.0
    %99 = vmatpush1.msra.mxu0 0.0
    %100 = vmatprep.subr.mxu0 0.0
    %101 = vmatpush1.msra.mxu0 0.0
    %102 = vmatprep.subr.mxu0 0.0
    %103 = vmatpush1.msra.mxu0 0.0
    %104 = vmatprep.subr.mxu0 0.0
    %105 = vmatpush1.msra.mxu0 0.0
    %106 = vmatprep.subr.mxu0 0.0
    %107 = vmatpush1.msra.mxu0 0.0
    %108 = vmatprep.subr.mxu0 0.0
    %109 = vmatpush1.msra.mxu0 0.0
    %110 = vmatprep.subr.mxu0 0.0
    %111 = vmatpush1.msra.mxu0 0.0
    %112 = vmatprep.subr.mxu0 0.0
    %113 = vmatpush1.msra.mxu0 0.0
    %114 = vmatprep.subr.mxu0 0.0
    %115 = vmatpush1.msra.mxu0 0.0
    %116 = vmatprep.subr.mxu0 0.0
    %117 = vmatpush1.msra.mxu0 0.0
    %118 = vmatprep.subr.mxu0 0.0
    %119 = vmatpush1.msra.mxu0 0.0
    %120 = vmatprep.subr.mxu0 0.0
    %121 = vmatpush1.msra.mxu0 0.0
    %122 = vmatprep.subr.mxu0 0.0
    %123 = vmatpush1.msra.mxu0 0.0
    %124 = vmatprep.subr.mxu0 0.0
    %125 = vmatpush1.msra.mxu0 0.0
    %126 = vmatprep.subr.mxu0 0.0
    %127 = vmatpush1.msra.mxu0 0.0
    %128 = vmatprep.subr.mxu0 0.0
    %129 = vmatpush1.msra.mxu0 0.0
    %130 = vmatprep.subr.mxu0 0.0
    %131 = vmatpush1.msra.mxu0 0.0
    %132 = vmatprep.subr.mxu0 0.0
    %133 = vmatpush1.msra.mxu0 0.0
    %134 = vmatprep.subr.mxu0 0.0
    %135 = vmatpush1.msra.mxu0 0.0
    %136 = vmatprep.subr.mxu0 0.0
    %137 = vmatpush1.msra.mxu0 0.0
    %138 = vmatprep.subr.mxu0 0.0
    %139 = vmatpush1.msra.mxu0 0.0
    %140 = vmatprep.subr.mxu0 0.0
    %141 = vmatpush1.msra.mxu0 0.0
    %142 = vmatprep.subr.mxu0 0.0
    %143 = vmatpush1.msra.mxu0 0.0
    %144 = vmatprep.subr.mxu0 0.0
    %145 = vmatpush1.msra.mxu0 0.0
    %146 = vmatprep.subr.mxu0 0.0
    %147 = vmatpush1.msra.mxu0 0.0
    %148 = vmatprep.subr.mxu0 0.0
    %149 = vmatpush1.msra.mxu0 0.0
    %150 = vmatprep.subr.mxu0 0.0
    %151 = vmatpush1.msra.mxu0 0.0
    %152 = vmatprep.mubr.f32.mxu0 0.0
    %153 = vmatmul.mubr.f32.gmra.mrb[0].mxu0 %v86
    %v154 = vpop.f32.mrb[0].mxu0
    %v155 = vadd.f32 0.0, %v154
    %v156 = vpop.f32.mrb[0].mxu0
    %157 = vdwg.mxu0
    %v158 = vld [vmem:[#allocation6] sm:$0xff]
    %vm159 = vcmask 130048
    %v161 = vsel %vm159, %v158, 0
    %163 = vmatprep.subr.mxu0 0.0
    %164 = vmatpush1.msra.mxu0 %v79
    %165 = vmatprep.subr.mxu0 0.0
    %166 = vmatpush1.msra.mxu0 %v80
    %167 = vmatprep.subr.mxu0 0.0
    %168 = vmatpush1.msra.mxu0 0.0
    %169 = vmatprep.subr.mxu0 0.0
    %170 = vmatpush1.msra.mxu0 0.0
    %171 = vmatprep.subr.mxu0 0.0
    %172 = vmatpush1.msra.mxu0 0.0
    %173 = vmatprep.subr.mxu0 0.0
    %174 = vmatpush1.msra.mxu0 0.0
    %175 = vmatprep.subr.mxu0 0.0
    %176 = vmatpush1.msra.mxu0 0.0
    %177 = vmatprep.subr.mxu0 0.0
    %178 = vmatpush1.msra.mxu0 0.0
    %179 = vmatprep.subr.mxu0 0.0
    %180 = vmatpush1.msra.mxu0 0.0
    %181 = vmatprep.subr.mxu0 0.0
    %182 = vmatpush1.msra.mxu0 0.0
    %183 = vmatprep.subr.mxu0 0.0
    %184 = vmatpush1.msra.mxu0 0.0
    %185 = vmatprep.subr.mxu0 0.0
    %186 = vmatpush1.msra.mxu0 0.0
    %187 = vmatprep.subr.mxu0 0.0
    %188 = vmatpush1.msra.mxu0 0.0
    %189 = vmatprep.subr.mxu0 0.0
    %190 = vmatpush1.msra.mxu0 0.0
    %191 = vmatprep.subr.mxu0 0.0
    %192 = vmatpush1.msra.mxu0 0.0
    %193 = vmatprep.subr.mxu0 0.0
    %194 = vmatpush1.msra.mxu0 0.0
    %195 = vmatprep.subr.mxu0 0.0
    %196 = vmatpush1.msra.mxu0 0.0
    %197 = vmatprep.subr.mxu0 0.0
    %198 = vmatpush1.msra.mxu0 0.0
    %199 = vmatprep.subr.mxu0 0.0
    %200 = vmatpush1.msra.mxu0 0.0
    %201 = vmatprep.subr.mxu0 0.0
    %202 = vmatpush1.msra.mxu0 0.0
    %203 = vmatprep.subr.mxu0 0.0
    %204 = vmatpush1.msra.mxu0 0.0
    %205 = vmatprep.subr.mxu0 0.0
    %206 = vmatpush1.msra.mxu0 0.0
    %207 = vmatprep.subr.mxu0 0.0
    %208 = vmatpush1.msra.mxu0 0.0
    %209 = vmatprep.subr.mxu0 0.0
    %210 = vmatpush1.msra.mxu0 0.0
    %211 = vmatprep.subr.mxu0 0.0
    %212 = vmatpush1.msra.mxu0 0.0
    %213 = vmatprep.subr.mxu0 0.0
    %214 = vmatpush1.msra.mxu0 0.0
    %215 = vmatprep.subr.mxu0 0.0
    %216 = vmatpush1.msra.mxu0 0.0
    %217 = vmatprep.subr.mxu0 0.0
    %218 = vmatpush1.msra.mxu0 0.0
    %219 = vmatprep.subr.mxu0 0.0
    %220 = vmatpush1.msra.mxu0 0.0
    %221 = vmatprep.subr.mxu0 0.0
    %222 = vmatpush1.msra.mxu0 0.0
    %223 = vmatprep.subr.mxu0 0.0
    %224 = vmatpush1.msra.mxu0 0.0
    %225 = vmatprep.subr.mxu0 0.0
    %226 = vmatpush1.msra.mxu0 0.0
    %227 = vmatprep.mubr.f32.mxu0 0.0
    %228 = vmatmul.mubr.f32.gmra.mrb[0].mxu0 %v161
    %v229 = vpop.f32.mrb[0].mxu0
    %v230 = vadd.f32 0.0, %v229
    %v231 = vpop.f32.mrb[0].mxu0
    %232 = vdwg.mxu0
    %v233 = vld [vmem:[#allocation8] sm:$0xff]
    %v235 = vsel %vm159, %v233, 0
    %237 = vmatprep.subr.mxu0 0.0
    %238 = vmatpush1.msra.mxu0 %v79
    %239 = vmatprep.subr.mxu0 0.0
    %240 = vmatpush1.msra.mxu0 %v80
    %241 = vmatprep.subr.mxu0 0.0
    %242 = vmatpush1.msra.mxu0 0.0
    %243 = vmatprep.subr.mxu0 0.0
    %244 = vmatpush1.msra.mxu0 0.0
    %245 = vmatprep.subr.mxu0 0.0
    %246 = vmatpush1.msra.mxu0 0.0
    %247 = vmatprep.subr.mxu0 0.0
    %248 = vmatpush1.msra.mxu0 0.0
    %249 = vmatprep.subr.mxu0 0.0
    %250 = vmatpush1.msra.mxu0 0.0
    %251 = vmatprep.subr.mxu0 0.0
    %252 = vmatpush1.msra.mxu0 0.0
    %253 = vmatprep.subr.mxu0 0.0
    %254 = vmatpush1.msra.mxu0 0.0
    %255 = vmatprep.subr.mxu0 0.0
    %256 = vmatpush1.msra.mxu0 0.0
    %257 = vmatprep.subr.mxu0 0.0
    %258 = vmatpush1.msra.mxu0 0.0
    %259 = vmatprep.subr.mxu0 0.0
    %260 = vmatpush1.msra.mxu0 0.0
    %261 = vmatprep.subr.mxu0 0.0
    %262 = vmatpush1.msra.mxu0 0.0
    %263 = vmatprep.subr.mxu0 0.0
    %264 = vmatpush1.msra.mxu0 0.0
    %265 = vmatprep.subr.mxu0 0.0
    %266 = vmatpush1.msra.mxu0 0.0
    %267 = vmatprep.subr.mxu0 0.0
    %268 = vmatpush1.msra.mxu0 0.0
    %269 = vmatprep.subr.mxu0 0.0
    %270 = vmatpush1.msra.mxu0 0.0
    %271 = vmatprep.subr.mxu0 0.0
    %272 = vmatpush1.msra.mxu0 0.0
    %273 = vmatprep.subr.mxu0 0.0
    %274 = vmatpush1.msra.mxu0 0.0
    %275 = vmatprep.subr.mxu0 0.0
    %276 = vmatpush1.msra.mxu0 0.0
    %277 = vmatprep.subr.mxu0 0.0
    %278 = vmatpush1.msra.mxu0 0.0
    %279 = vmatprep.subr.mxu0 0.0
    %280 = vmatpush1.msra.mxu0 0.0
    %281 = vmatprep.subr.mxu0 0.0
    %282 = vmatpush1.msra.mxu0 0.0
    %283 = vmatprep.subr.mxu0 0.0
    %284 = vmatpush1.msra.mxu0 0.0
    %285 = vmatprep.subr.mxu0 0.0
    %286 = vmatpush1.msra.mxu0 0.0
    %287 = vmatprep.subr.mxu0 0.0
    %288 = vmatpush1.msra.mxu0 0.0
    %289 = vmatprep.subr.mxu0 0.0
    %290 = vmatpush1.msra.mxu0 0.0
    %291 = vmatprep.subr.mxu0 0.0
    %292 = vmatpush1.msra.mxu0 0.0
    %293 = vmatprep.subr.mxu0 0.0
    %294 = vmatpush1.msra.mxu0 0.0
    %295 = vmatprep.subr.mxu0 0.0
    %296 = vmatpush1.msra.mxu0 0.0
    %297 = vmatprep.subr.mxu0 0.0
    %298 = vmatpush1.msra.mxu0 0.0
    %299 = vmatprep.subr.mxu0 0.0
    %300 = vmatpush1.msra.mxu0 0.0
    %301 = vmatprep.mubr.f32.mxu0 0.0
    %302 = vmatmul.mubr.f32.gmra.mrb[0].mxu0 %v235
    %v303 = vpop.f32.mrb[0].mxu0
    %v304 = vadd.f32 0.0, %v303
    %v305 = vpop.f32.mrb[0].mxu0
    %306 = vdwg.mxu0
    %v307 = vadd.f32 %v155, %v230
    %v308 = vlaneseq
    %v309 = vshrl.u32 %v308, 7
    %v310 = vsub.s32 0, %v309
    %v311 = vrot.slane %v81, %v310
    %v312 = vadd.f32 %v307, %v311
    %v313 = vmax.f32 %v312, 0.0
    %v314 = vadd.f32 %v155, %v304
    %v315 = vadd.f32 %v314, %v311
    %v316 = vmax.f32 %v315, 0.0
    %v317 = vlaneseq
    %v318 = vshrl.u32 %v317, 7
    %v319 = vsub.s32 0, %v318
    %v320 = vrot.slane %v82, %v319
    %v321 = vmul.f32 %v313, %v320
    %322 = vadd.xlane.f32.xlu0 %v321
    %v323 = vpop.xlane.xlu0 %322
    %v324 = vrot.slane %v323, 4
    %v325 = vadd.f32 %v323, %v324
    %v326 = vrot.slane %v325, 2
    %v327 = vadd.f32 %v325, %v326
    %v328 = vrot.slane %v327, 1
    %v329 = vadd.f32 %v327, %v328
    %s330 = vtos %v329
    %v331 = vmul.f32 %v316, %v320
    %332 = vadd.xlane.f32.xlu0 %v331
    %v333 = vpop.xlane.xlu0 %332
    %v334 = vmul.f32 %v333, 1.442695
    %v335 = vpow.pop %v334
    %vm336 = vcmask 7168
    %v337 = vsel %vm336, %v335, 0.0
    %338 = vadd.xlane.f32.xlu0 %v337
    %v339 = vpop.xlane.xlu0 %338
    %v340 = vrot.slane %v339, 4
    %v341 = vadd.f32 %v339, %v340
    %v342 = vrot.slane %v341, 2
    %v343 = vadd.f32 %v341, %v342
    %v344 = vrot.slane %v343, 1
    %v345 = vadd.f32 %v343, %v344
    %s346 = vtos %v345
    %s347 = sld [smem:[#allocation2]]
    %s348 = sadd.f32 %s347, %s330
    %s349 = scalar_lea.smem [#allocation2], 0
    %350 = sst [smem:[%s349]] %s348
    %s351 = sld [smem:[#allocation2 + $0x1]]
    %s352 = sadd.f32 %s351, %s346
    %s353 = scalar_lea.smem [#allocation2], 1
    %354 = sst [smem:[%s353]] %s352
    // Predicated region
    $region38: #{tpu_custom_call.1} parent=1 // pred_check
      %p355 = pneg %p67
    $region39: #{tpu_custom_call.1} parent=1 // pred_check_branch
      %357 = sbr.rel (%p355) target = $region41
    $region40: #{tpu_custom_call.1} parent=1 // pred_region
      %s358 = sld [smem:[#allocation2]]
      %s359 = smul.f32 %s358, 0.125
      %s360 = sld [smem:[#allocation2 + $0x1]]
      %s361 = smul.f32 %s360, 0.125
      %v362 = vstv %s361
      %v363 = vlog2.pop %v362
      %v364 = vmul.f32 %v363, 0.6931472
      %s365 = vtos %v364
      %s366 = ssub.f32 %s359, %s365
      %s367 = scalar_lea.smem [#allocation11], 0
      %368 = sst [smem:[%s367]] %s366
    $region41: #{tpu_custom_call.1} parent=1 // pred_fallthru
      _
    // Predicated region
    $region42: #{tpu_custom_call.1} parent=1 // pred_check
      _
    $region43: #{tpu_custom_call.1} parent=1 // pred_check_branch
      %370 = sbr.rel (0) target = $region45
    $region44: #{tpu_custom_call.1} parent=1 // pred_region
      %s372 = ssub.s32 16, 16
      %373 = vsyncadd [#allocation5], %s372
      %376 = dma.smem_to_hbm [#allocation11], 16, %s4, [#allocation5]
    $region45: #{tpu_custom_call.1} parent=1 // pred_fallthru
      _
    // Predicated region
    $region46: #{tpu_custom_call.1} parent=1 // pred_check
      _
    $region47: #{tpu_custom_call.1} parent=1 // pred_check_branch
      %378 = sbr.rel (0) target = $region49
    $region48: #{tpu_custom_call.1} parent=1 // pred_region
      %379 = dma.done [#allocation5], 16
    $region49: #{tpu_custom_call.1} parent=1 // pred_fallthru
      _
    %380 = sfence
    %381 = vsyncpa [#allocation4], 1
    %382 = vsyncpa [#allocation7], 1
    %383 = vsyncpa [#allocation10], 1
    %384 = vsyncpa [#allocation5], 1

</llo_original>
